<compile_context>
chip_gen: v5e
topology: v5e:2x2
jax: 0.10.0
libtpu: 0.0.40
codegen_flags: <defaults>
</compile_context>

<pallas_src>
import functools

import jax
import jax.numpy as jnp
from jax.experimental import pallas as pl
from jax.experimental.pallas import tpu as pltpu


# --------------------------------------------------------------------------- #
# Kernels
# --------------------------------------------------------------------------- #
def _attn_core(q_ref, k_ref, v_ref, o_ref, *, scale, keep_mul_fn=None):
    # q_ref: (G, Tq, Dk), k_ref: (G, Sk, Dk), v_ref: (G, Sk, Dv), o_ref: (G, Tq, Dv)
    q = q_ref[...]
    if scale != 1.0:
        # Fold the softmax scale into q: G*Tq*Dk multiplies instead of G*Tq*Sk.
        q = q * jnp.asarray(scale, q.dtype)

    # q @ k^T without materializing a transpose: contract Dk of both operands.
    s = jax.lax.dot_general(
        q, k_ref[...],
        dimension_numbers=(((2,), (2,)), ((0,), (0,))),
        preferred_element_type=jnp.float32,
    )  # (G, Tq, Sk) f32

    # Numerically stable softmax over the last dim; reciprocal goes to the EUP.
    m = jnp.max(s, axis=-1, keepdims=True)
    e = jnp.exp(s - m)
    denom = jnp.sum(e, axis=-1, keepdims=True)          # (G, Tq, 1)
    inv = pl.reciprocal(denom, approx=True)              # EUP slot, ~free
    probs = e * inv

    if keep_mul_fn is not None:
        # Dropout: multiply by {1/(1-p), 0} keep multiplier.
        probs = probs * keep_mul_fn(probs.shape)

    o = jax.lax.dot_general(
        probs.astype(v_ref.dtype), v_ref[...],
        dimension_numbers=(((2,), (1,)), ((0,), (0,))),
        preferred_element_type=jnp.float32,
    )  # (G, Tq, Dv)
    o_ref[...] = o.astype(o_ref.dtype)


def _sdpa_nodrop_kernel(q_ref, k_ref, v_ref, o_ref, *, scale):
    _attn_core(q_ref, k_ref, v_ref, o_ref, scale=scale, keep_mul_fn=None)


def _sdpa_prng_kernel(seed_ref, q_ref, k_ref, v_ref, o_ref, *, scale, p_drop):
    # Per-grid-step seeding: mix the user seed with the grid coordinates so
    # different tiles get independent keep patterns.
    pltpu.prng_seed(seed_ref[0], pl.program_id(0), pl.program_id(1))
    thr = jnp.int32(int(p_drop * float(1 << 31)))        # threshold in [0, 2^31)
    inv_keep = jnp.float32(1.0 / (1.0 - p_drop))

    def keep_mul(shape):
        bits = pltpu.prng_random_bits(shape)
        if bits.dtype != jnp.int32:
            bits = pltpu.bitcast(bits, jnp.int32)
        bits = bits & jnp.int32(0x7FFFFFFF)               # uniform in [0, 2^31)
        return jnp.where(bits >= thr, inv_keep, jnp.float32(0.0))

    _attn_core(q_ref, k_ref, v_ref, o_ref, scale=scale, keep_mul_fn=keep_mul)


def _sdpa_mask_kernel(q_ref, k_ref, v_ref, m_ref, o_ref, *, scale, p_drop):
    # Fallback path: uint8 keep-mask generated in the wrapper (4x less DMA than f32).
    inv_keep = jnp.float32(1.0 / (1.0 - p_drop))

    def keep_mul(shape):
        del shape
        return jnp.where(m_ref[...] != 0, inv_keep, jnp.float32(0.0))

    _attn_core(q_ref, k_ref, v_ref, o_ref, scale=scale, keep_mul_fn=keep_mul)


# --------------------------------------------------------------------------- #
# Tiling heuristics
# --------------------------------------------------------------------------- #
def _tpu_vmem_capacity_bytes():
    try:
        return int(pltpu.get_tpu_info().vmem_capacity_bytes)
    except Exception:
        return 64 << 20  # conservative (v7x-sized) fallback


def _pick_q_tile(sq, sk):
    """Full Sq if small; otherwise a divisor of Sq (multiple of 8) with the
    (Tq, Sk) f32 score slab kept under ~2 MiB."""
    cap = max(128, min(512, (2 << 20) // max(4 * sk, 1)))
    cap = max(8, (cap // 8) * 8)
    if sq <= cap:
        return sq
    for d in range(cap, 7, -1):
        if sq % d == 0 and d % 8 == 0:
            return d
    return sq


def _pick_group(bh, tq, sk, dk, dv, in_size, out_size, budget_bytes):
    """Largest divisor of BH whose per-step working set fits the VMEM budget.
    K/V counted once (Buffered(1)); intermediates counted once; real dtype sizes."""
    per_head = (
        2 * tq * dk * in_size            # q tile (double-buffered)
        + sk * dk * in_size              # K resident (single buffer)
        + sk * dv * in_size              # V resident (single buffer)
        + 2 * tq * dv * out_size         # output tile (double-buffered)
        + 3 * tq * sk * 4                # s / e / probs live f32 intermediates
        + tq * sk * 4                    # random bits / keep multiplier
    )
    cap = max(1, budget_bytes // max(per_head, 1))
    g = 1
    for d in range(1, bh + 1):
        if bh % d == 0 and d <= cap:
            g = d
    return g


# --------------------------------------------------------------------------- #
# Wrapper
# --------------------------------------------------------------------------- #
def sdpa_dropout(query, key, value, *, scale=1.0, p_drop=0.1, dropout_seed=None,
                 mxu_dtype=None):
    """query: (B,H,Sq,Dk), key: (B,H,Sk,Dk), value: (B,H,Sk,Dv) -> (B,H,Sq,Dv)."""
    B, H, Sq, Dk = query.shape
    Bk, Hk, Sk, Dk2 = key.shape
    Bv, Hv, Sk2, Dv = value.shape
    assert (B, H) == (Bk, Hk) == (Bv, Hv) and Dk == Dk2 and Sk == Sk2
    out_dtype = query.dtype

    if p_drop >= 1.0:  # everything dropped
        return jnp.zeros((B, H, Sq, Dv), dtype=out_dtype)
    if p_drop > 0.0 and dropout_seed is None:
        raise ValueError("p_drop > 0 requires an explicit dropout_seed "
                         "(training-mode dropout must not reuse a fixed key).")

    BH = B * H
    q = query.reshape(BH, Sq, Dk)
    k = key.reshape(BH, Sk, Dk)
    v = value.reshape(BH, Sk, Dv)
    if mxu_dtype is not None:
        # bf16 MXU inputs (v6e/v7x): halves Q/K/V HBM bytes, f32 accumulation kept.
        q, k, v = q.astype(mxu_dtype), k.astype(mxu_dtype), v.astype(mxu_dtype)

    in_size = jnp.dtype(q.dtype).itemsize
    out_size = jnp.dtype(out_dtype).itemsize

    vmem_cap = _tpu_vmem_capacity_bytes()
    budget = max(8 << 20, int(vmem_cap * 0.35))   # headroom for megacore K/V duplication
    vmem_limit = int(vmem_cap * 0.75)

    Tq = _pick_q_tile(Sq, Sk)
    G = _pick_group(BH, Tq, Sk, Dk, Dv, in_size, out_size, budget)

    def build_and_run(mode, buffered_kv):
        kv_kwargs = {"pipeline_mode": pl.Buffered(1)} if buffered_kv else {}
        q_spec = pl.BlockSpec((G, Tq, Dk), lambda g, qi, *_: (g, qi, 0))
        k_spec = pl.BlockSpec((G, Sk, Dk), lambda g, qi, *_: (g, 0, 0), **kv_kwargs)
        v_spec = pl.BlockSpec((G, Sk, Dv), lambda g, qi, *_: (g, 0, 0), **kv_kwargs)
        o_spec = pl.BlockSpec((G, Tq, Dv), lambda g, qi, *_: (g, qi, 0))

        if mode == "prng":
            kernel = functools.partial(_sdpa_prng_kernel, scale=float(scale),
                                       p_drop=float(p_drop))
            in_specs = [q_spec, k_spec, v_spec]
            num_pref = 1
            seed = jnp.array([int(dropout_seed) & 0x7FFFFFFF], dtype=jnp.int32)
            args = (seed, q, k, v)
        elif mode == "mask":
            kernel = functools.partial(_sdpa_mask_kernel, scale=float(scale),
                                       p_drop=float(p_drop))
            m_spec = pl.BlockSpec((G, Tq, Sk), lambda g, qi, *_: (g, qi, 0))
            in_specs = [q_spec, k_spec, v_spec, m_spec]
            num_pref = 0
            keep = jax.random.bernoulli(
                jax.random.PRNGKey(int(dropout_seed) & 0x7FFFFFFF),
                1.0 - p_drop, (BH, Sq, Sk)).astype(jnp.uint8)
            args = (q, k, v, keep)
        else:  # no dropout: no mask DMA, no extra multiply
            kernel = functools.partial(_sdpa_nodrop_kernel, scale=float(scale))
            in_specs = [q_spec, k_spec, v_spec]
            num_pref = 0
            args = (q, k, v)

        call = pl.pallas_call(
            kernel,
            out_shape=jax.ShapeDtypeStruct((BH, Sq, Dv), out_dtype),
            grid_spec=pltpu.PrefetchScalarGridSpec(
                num_scalar_prefetch=num_pref,
                grid=(BH // G, Sq // Tq),
                in_specs=in_specs,
                out_specs=o_spec,
            ),
            compiler_params=pltpu.CompilerParams(
                # Head-group axis first so a megacore split keeps K/V disjoint per core.
                dimension_semantics=("parallel", "parallel"),
                vmem_limit_bytes=vmem_limit,
            ),
        )
        return jax.block_until_ready(call(*args))

    if p_drop > 0.0:
        attempts = [("prng", True), ("prng", False), ("mask", True), ("mask", False)]
    else:
        attempts = [("none", True), ("none", False)]

    last_err = None
    for mode, buffered in attempts:
        try:
            out = build_and_run(mode, buffered)
            return out.reshape(B, H, Sq, Dv)
        except Exception as e:   # fall back to the next (simpler) configuration
            last_err = e
    raise last_err


# --------------------------------------------------------------------------- #
# Self-test
# --------------------------------------------------------------------------- #
if __name__ == "__main__":
    # Small, mutually-consistent shapes for batched attention matmuls.
    B, H, Sq, Sk, Dk, Dv = 2, 4, 8, 16, 16, 16
    k0, k1, k2 = jax.random.split(jax.random.PRNGKey(0), 3)
    query = jax.random.normal(k0, (B, H, Sq, Dk), dtype=jnp.float32)
    key = jax.random.normal(k1, (B, H, Sk, Dk), dtype=jnp.float32)
    value = jax.random.normal(k2, (B, H, Sk, Dv), dtype=jnp.float32)

    # Deterministic check (dropout disabled) against a pure-JAX reference.
    out_nodrop = sdpa_dropout(query, key, value, scale=1.0, p_drop=0.0)
    jax.block_until_ready(out_nodrop)
    scores = jnp.einsum("bhqd,bhkd->bhqk", query, key)
    ref = jnp.einsum("bhqk,bhkd->bhqd", jax.nn.softmax(scores, axis=-1), value)
    assert jnp.allclose(out_nodrop, ref, atol=2e-2, rtol=2e-2), \
        float(jnp.max(jnp.abs(out_nodrop - ref)))

    # Training-mode dropout path (p = 0.1), bf16 MXU inputs (v6e/v7x-friendly).
    out = sdpa_dropout(query, key, value, scale=1.0, p_drop=0.1,
                       dropout_seed=1234, mxu_dtype=jnp.bfloat16)
    jax.block_until_ready(out)

    assert out.shape == (B, H, Sq, Dv)
    assert jnp.all(jnp.isfinite(out))
    print("KERNEL_OK")
</pallas_src>

<mosaic_0001>
module attributes {stable_mosaic.version = 11 : i64} {
  func.func @_sdpa_nodrop_kernel(%arg0: i32, %arg1: i32, %arg2: memref<8x8x16xf32, #tpu.memory_space<vmem>>, %arg3: memref<8x16x16xf32, #tpu.memory_space<vmem>>, %arg4: memref<8x16x16xf32, #tpu.memory_space<vmem>>, %arg5: memref<8x8x16xf32, #tpu.memory_space<vmem>>) attributes {dimension_semantics = [#tpu.dimension_semantics<parallel>, #tpu.dimension_semantics<parallel>], iteration_bounds = array<i64: 1, 1>, scalar_prefetch = 0 : i64, scratch_operands = 0 : i64, tpu.core_type = #tpu.core_type<tc>, window_params = [{transform_indices = @transform_0, window_bounds = array<i64: 8, 8, 16>}, {pipeline_mode = #tpu.pipeline_mode<synchronous>, transform_indices = @transform_1, window_bounds = array<i64: 8, 16, 16>}, {pipeline_mode = #tpu.pipeline_mode<synchronous>, transform_indices = @transform_2, window_bounds = array<i64: 8, 16, 16>}, {transform_indices = @transform_3, window_bounds = array<i64: 8, 8, 16>}]} {
    %c0 = arith.constant 0 : index
    %c0_0 = arith.constant 0 : index
    %c0_1 = arith.constant 0 : index
    %0 = vector.load %arg2[%c0, %c0_0, %c0_1] : memref<8x8x16xf32, #tpu.memory_space<vmem>>, vector<8x8x16xf32>
    %c0_2 = arith.constant 0 : index
    %c0_3 = arith.constant 0 : index
    %c0_4 = arith.constant 0 : index
    %1 = vector.load %arg3[%c0_2, %c0_3, %c0_4] : memref<8x16x16xf32, #tpu.memory_space<vmem>>, vector<8x16x16xf32>
    %cst = arith.constant dense<0.000000e+00> : vector<8x8x16xf32>
    %2 = tpu.matmul %0, %1, %cst {dimension_numbers = #tpu.dot_dimension_numbers<[2], [2], [1], [1], [0, 0, 0, 1, 1, 1], [0], [0]>} : vector<8x8x16xf32>, vector<8x16x16xf32>, vector<8x8x16xf32> -> vector<8x8x16xf32>
    %cst_5 = arith.constant dense<0xFF800000> : vector<8x8xf32>
    %3 = vector.multi_reduction <maximumf>, %2, %cst_5 [2] : vector<8x8x16xf32> to vector<8x8xf32>
    %4 = vector.shape_cast %3 : vector<8x8xf32> to vector<8x8x1xf32>
    %5 = vector.broadcast %4 : vector<8x8x1xf32> to vector<8x8x16xf32>
    %6 = arith.subf %2, %5 : vector<8x8x16xf32>
    %7 = math.exp %6 : vector<8x8x16xf32>
    %cst_6 = arith.constant dense<0.000000e+00> : vector<8x8xf32>
    %8 = vector.multi_reduction <add>, %7, %cst_6 [2] : vector<8x8x16xf32> to vector<8x8xf32>
    %9 = vector.shape_cast %8 : vector<8x8xf32> to vector<8x8x1xf32>
    %10 = tpu.reciprocal %9 {approx = true} : vector<8x8x1xf32> -> vector<8x8x1xf32>
    %11 = vector.broadcast %10 : vector<8x8x1xf32> to vector<8x8x16xf32>
    %12 = arith.mulf %7, %11 : vector<8x8x16xf32>
    %c0_7 = arith.constant 0 : index
    %c0_8 = arith.constant 0 : index
    %c0_9 = arith.constant 0 : index
    %13 = vector.load %arg4[%c0_7, %c0_8, %c0_9] : memref<8x16x16xf32, #tpu.memory_space<vmem>>, vector<8x16x16xf32>
    %cst_10 = arith.constant dense<0.000000e+00> : vector<8x8x16xf32>
    %14 = tpu.matmul %12, %13, %cst_10 {dimension_numbers = #tpu.dot_dimension_numbers<[2], [1], [1], [2], [0, 0, 0, 1, 1, 2], [0], [0]>} : vector<8x8x16xf32>, vector<8x16x16xf32>, vector<8x8x16xf32> -> vector<8x8x16xf32>
    %c0_11 = arith.constant 0 : index
    %c0_12 = arith.constant 0 : index
    %c0_13 = arith.constant 0 : index
    %15 = vector.load %arg5[%c0_11, %c0_12, %c0_13] : memref<8x8x16xf32, #tpu.memory_space<vmem>>, vector<8x8x16xf32>
    tpu.vector_store %arg5[%c0_11, %c0_12, %c0_13], %14 {strides = array<i32>} : memref<8x8x16xf32, #tpu.memory_space<vmem>>, vector<8x8x16xf32>,
    return
  }
  func.func @transform_0(%arg0: i32, %arg1: i32) -> (i32, i32, i32) {
    %c0_i32 = arith.constant 0 : i32
    %c0_i32_0 = arith.constant 0 : i32
    return %arg0, %arg1, %c0_i32 : i32, i32, i32
  }
  func.func @transform_1(%arg0: i32, %arg1: i32) -> (i32, i32, i32) {
    %c0_i32 = arith.constant 0 : i32
    %c0_i32_0 = arith.constant 0 : i32
    %c0_i32_1 = arith.constant 0 : i32
    return %arg0, %c0_i32, %c0_i32_0 : i32, i32, i32
  }
  func.func @transform_2(%arg0: i32, %arg1: i32) -> (i32, i32, i32) {
    %c0_i32 = arith.constant 0 : i32
    %c0_i32_0 = arith.constant 0 : i32
    %c0_i32_1 = arith.constant 0 : i32
    return %arg0, %c0_i32, %c0_i32_0 : i32, i32, i32
  }
  func.func @transform_3(%arg0: i32, %arg1: i32) -> (i32, i32, i32) {
    %c0_i32 = arith.constant 0 : i32
    %c0_i32_0 = arith.constant 0 : i32
    return %arg0, %arg1, %c0_i32 : i32, i32, i32
  }
}

module attributes {stable_mosaic.version = 11 : i64} {
  func.func @_sdpa_nodrop_kernel(%arg0: i32, %arg1: i32, %arg2: memref<8x8x16xf32, #tpu.memory_space<vmem>>, %arg3: memref<8x16x16xf32, #tpu.memory_space<vmem>>, %arg4: memref<8x16x16xf32, #tpu.memory_space<vmem>>, %arg5: memref<8x8x16xf32, #tpu.memory_space<vmem>>) attributes {dimension_semantics = [#tpu.dimension_semantics<parallel>, #tpu.dimension_semantics<parallel>], iteration_bounds = array<i64: 1, 1>, scalar_prefetch = 0 : i64, scratch_operands = 0 : i64, tpu.core_type = #tpu.core_type<tc>, window_params = [{transform_indices = @transform_0, window_bounds = array<i64: 8, 8, 16>}, {transform_indices = @transform_1, window_bounds = array<i64: 8, 16, 16>}, {transform_indices = @transform_2, window_bounds = array<i64: 8, 16, 16>}, {transform_indices = @transform_3, window_bounds = array<i64: 8, 8, 16>}]} {
    %c0 = arith.constant 0 : index
    %c0_0 = arith.constant 0 : index
    %c0_1 = arith.constant 0 : index
    %0 = vector.load %arg2[%c0, %c0_0, %c0_1] : memref<8x8x16xf32, #tpu.memory_space<vmem>>, vector<8x8x16xf32>
    %c0_2 = arith.constant 0 : index
    %c0_3 = arith.constant 0 : index
    %c0_4 = arith.constant 0 : index
    %1 = vector.load %arg3[%c0_2, %c0_3, %c0_4] : memref<8x16x16xf32, #tpu.memory_space<vmem>>, vector<8x16x16xf32>
    %cst = arith.constant dense<0.000000e+00> : vector<8x8x16xf32>
    %2 = tpu.matmul %0, %1, %cst {dimension_numbers = #tpu.dot_dimension_numbers<[2], [2], [1], [1], [0, 0, 0, 1, 1, 1], [0], [0]>} : vector<8x8x16xf32>, vector<8x16x16xf32>, vector<8x8x16xf32> -> vector<8x8x16xf32>
    %cst_5 = arith.constant dense<0xFF800000> : vector<8x8xf32>
    %3 = vector.multi_reduction <maximumf>, %2, %cst_5 [2] : vector<8x8x16xf32> to vector<8x8xf32>
    %4 = vector.shape_cast %3 : vector<8x8xf32> to vector<8x8x1xf32>
    %5 = vector.broadcast %4 : vector<8x8x1xf32> to vector<8x8x16xf32>
    %6 = arith.subf %2, %5 : vector<8x8x16xf32>
    %7 = math.exp %6 : vector<8x8x16xf32>
    %cst_6 = arith.constant dense<0.000000e+00> : vector<8x8xf32>
    %8 = vector.multi_reduction <add>, %7, %cst_6 [2] : vector<8x8x16xf32> to vector<8x8xf32>
    %9 = vector.shape_cast %8 : vector<8x8xf32> to vector<8x8x1xf32>
    %10 = tpu.reciprocal %9 {approx = true} : vector<8x8x1xf32> -> vector<8x8x1xf32>
    %11 = vector.broadcast %10 : vector<8x8x1xf32> to vector<8x8x16xf32>
    %12 = arith.mulf %7, %11 : vector<8x8x16xf32>
    %c0_7 = arith.constant 0 : index
    %c0_8 = arith.constant 0 : index
    %c0_9 = arith.constant 0 : index
    %13 = vector.load %arg4[%c0_7, %c0_8, %c0_9] : memref<8x16x16xf32, #tpu.memory_space<vmem>>, vector<8x16x16xf32>
    %cst_10 = arith.constant dense<0.000000e+00> : vector<8x8x16xf32>
    %14 = tpu.matmul %12, %13, %cst_10 {dimension_numbers = #tpu.dot_dimension_numbers<[2], [1], [1], [2], [0, 0, 0, 1, 1, 2], [0], [0]>} : vector<8x8x16xf32>, vector<8x16x16xf32>, vector<8x8x16xf32> -> vector<8x8x16xf32>
    %c0_11 = arith.constant 0 : index
    %c0_12 = arith.constant 0 : index
    %c0_13 = arith.constant 0 : index
    %15 = vector.load %arg5[%c0_11, %c0_12, %c0_13] : memref<8x8x16xf32, #tpu.memory_space<vmem>>, vector<8x8x16xf32>
    tpu.vector_store %arg5[%c0_11, %c0_12, %c0_13], %14 {strides = array<i32>} : memref<8x8x16xf32, #tpu.memory_space<vmem>>, vector<8x8x16xf32>,
    return
  }
  func.func @transform_0(%arg0: i32, %arg1: i32) -> (i32, i32, i32) {
    %c0_i32 = arith.constant 0 : i32
    %c0_i32_0 = arith.constant 0 : i32
    return %arg0, %arg1, %c0_i32 : i32, i32, i32
  }
  func.func @transform_1(%arg0: i32, %arg1: i32) -> (i32, i32, i32) {
    %c0_i32 = arith.constant 0 : i32
    %c0_i32_0 = arith.constant 0 : i32
    %c0_i32_1 = arith.constant 0 : i32
    return %arg0, %c0_i32, %c0_i32_0 : i32, i32, i32
  }
  func.func @transform_2(%arg0: i32, %arg1: i32) -> (i32, i32, i32) {
    %c0_i32 = arith.constant 0 : i32
    %c0_i32_0 = arith.constant 0 : i32
    %c0_i32_1 = arith.constant 0 : i32
    return %arg0, %c0_i32, %c0_i32_0 : i32, i32, i32
  }
  func.func @transform_3(%arg0: i32, %arg1: i32) -> (i32, i32, i32) {
    %c0_i32 = arith.constant 0 : i32
    %c0_i32_0 = arith.constant 0 : i32
    return %arg0, %arg1, %c0_i32 : i32, i32, i32
  }
}

</mosaic_0001>

<llo_original>
// kernel: tpu_custom_call.1
$region0: #{tpu_custom_call.1}
  #allocation0 [shape = 'u32[]', space=smem, size = 0x4, offset = 0x4, fixed_abs, tag = 'smem constant byte address 0x4 - core index']
  #allocation1 [shape = 'u32[72,128]{1,0:T(1,128)}', space=vmem, size = 0x9000, scoped, tag = 'internal scratch']
  %s0 = inlined_call_operand.hbm [shape: f32[8,8,16], index: 0, kind: input, shape index: {}]
  %s1 = inlined_call_operand.hbm [shape: f32[8,16,16], index: 1, kind: input, shape index: {}]
  %s2 = inlined_call_operand.hbm [shape: f32[8,16,16], index: 2, kind: input, shape index: {}]
  %s3 = inlined_call_operand.hbm [shape: f32[8,8,16], index: 3, kind: output, shape index: {}]
  %s4 = sld [smem:[#allocation0]]
  $region34: #{tpu_custom_call.1} parent=0
    _
  %s6 = ssub.s32 1, %s4
  %s7 = scalar_select 0, %s6, %s4
  $region1: #{tpu_custom_call.1} parent=0
    #allocation2 [shape = 'u8[32768]{0}', space=vmem, size = 0x8000, scoped, tag = 'input window, operand 0, single buffered']
    #allocation3 [shape = 's32[1]{0}', space=sflag, size = 0x4, scoped, tag = 'scoped memory for tpu_custom_call.1']
    #allocation4 [shape = 's32[1]{0}', space=sflag, size = 0x4, scoped, tag = 'scoped memory for tpu_custom_call.1']
    #allocation5 [shape = 'u8[65536]{0}', space=vmem, size = 0x10000, scoped, tag = 'input window, operand 1, single buffered']
    #allocation6 [shape = 's32[1]{0}', space=sflag, size = 0x4, scoped, tag = 'scoped memory for tpu_custom_call.1']
    #allocation7 [shape = 'u8[65536]{0}', space=vmem, size = 0x10000, scoped, tag = 'input window, operand 2, single buffered']
    #allocation8 [shape = 'u8[32768]{0}', space=vmem, size = 0x8000, scoped, tag = 'output window, operand 0, single buffered']
    %8 = vsyncpa [#allocation3], 0
    %9 = vsyncpa [#allocation6], 0
    %10 = vsyncpa [#allocation4], 0
    // Predicated region
    $region2: #{tpu_custom_call.1} parent=1 // pred_check
      _
    $region3: #{tpu_custom_call.1} parent=1 // pred_check_branch
      %12 = sbr.rel (0) target = $region5
    $region4: #{tpu_custom_call.1} parent=1 // pred_region
      %14 = vsyncadd [#allocation3], 0
      %s15 = sshll.u32 %s0, 4
      %s16 = int_to_ptr.hbm [resolvable:$true] %s15
      %s17 = sshll.u32 [#allocation2], 4
      %s18 = int_to_ptr.vmem [resolvable:$true] %s17
      %23 = dma.hbm_to_vmem [thread:$0]  %s16, 1024, %s18, [#allocation3], 128, 128, 8
    $region5: #{tpu_custom_call.1} parent=1 // pred_fallthru
      _
    // Predicated region
    $region6: #{tpu_custom_call.1} parent=1 // pred_check
      _
    $region7: #{tpu_custom_call.1} parent=1 // pred_check_branch
      %25 = sbr.rel (0) target = $region9
    $region8: #{tpu_custom_call.1} parent=1 // pred_region
      %27 = vsyncadd [#allocation6], 0
      %s28 = sshll.u32 %s1, 4
      %s29 = int_to_ptr.hbm [resolvable:$true] %s28
      %s30 = sshll.u32 [#allocation5], 4
      %s31 = int_to_ptr.vmem [resolvable:$true] %s30
      %36 = dma.hbm_to_vmem [thread:$0]  %s29, 2048, %s31, [#allocation6], 128, 128, 8
    $region9: #{tpu_custom_call.1} parent=1 // pred_fallthru
      _
    // Predicated region
    $region10: #{tpu_custom_call.1} parent=1 // pred_check
      _
    $region11: #{tpu_custom_call.1} parent=1 // pred_check_branch
      %38 = sbr.rel (0) target = $region13
    $region12: #{tpu_custom_call.1} parent=1 // pred_region
      %40 = vsyncadd [#allocation6], 0
      %s41 = sshll.u32 %s2, 4
      %s42 = int_to_ptr.hbm [resolvable:$true] %s41
      %s43 = sshll.u32 [#allocation7], 4
      %s44 = int_to_ptr.vmem [resolvable:$true] %s43
      %49 = dma.hbm_to_vmem [thread:$0]  %s42, 2048, %s44, [#allocation6], 128, 128, 8
    $region13: #{tpu_custom_call.1} parent=1 // pred_fallthru
      _
    // Predicated region
    $region14: #{tpu_custom_call.1} parent=1 // pred_check
      _
    $region15: #{tpu_custom_call.1} parent=1 // pred_check_branch
      %51 = sbr.rel (0) target = $region17
    $region16: #{tpu_custom_call.1} parent=1 // pred_region
      %53 = dma.done [#allocation3], 1024
    $region17: #{tpu_custom_call.1} parent=1 // pred_fallthru
      _
    // Predicated region
    $region18: #{tpu_custom_call.1} parent=1 // pred_check
      _
    $region19: #{tpu_custom_call.1} parent=1 // pred_check_branch
      %55 = sbr.rel (0) target = $region21
    $region20: #{tpu_custom_call.1} parent=1 // pred_region
      %57 = dma.done [#allocation6], 2048
    $region21: #{tpu_custom_call.1} parent=1 // pred_fallthru
      _
    // Predicated region
    $region22: #{tpu_custom_call.1} parent=1 // pred_check
      _
    $region23: #{tpu_custom_call.1} parent=1 // pred_check_branch
      %59 = sbr.rel (0) target = $region25
    $region24: #{tpu_custom_call.1} parent=1 // pred_region
      %61 = dma.done [#allocation6], 2048
    $region25: #{tpu_custom_call.1} parent=1 // pred_fallthru
      _
    %v62 = vld [vmem:[#allocation2] sm:$0xff]
    %v63 = vld [vmem:[#allocation2 + $0x8] sm:$0xff]
    %v64 = vld [vmem:[#allocation2 + $0x10] sm:$0xff]
    %v65 = vld [vmem:[#allocation2 + $0x18] sm:$0xff]
    %v66 = vld [vmem:[#allocation2 + $0x20] sm:$0xff]
    %v67 = vld [vmem:[#allocation2 + $0x28] sm:$0xff]
    %v68 = vld [vmem:[#allocation2 + $0x30] sm:$0xff]
    %v69 = vld [vmem:[#allocation2 + $0x38] sm:$0xff]
    %v70 = vld [vmem:[#allocation5] sm:$0xff]
    %v71 = vld [vmem:[#allocation5 + $0x8] sm:$0xff]
    %v72 = vld [vmem:[#allocation5 + $0x10] sm:$0xff]
    %v73 = vld [vmem:[#allocation5 + $0x18] sm:$0xff]
    %v74 = vld [vmem:[#allocation5 + $0x20] sm:$0xff]
    %v75 = vld [vmem:[#allocation5 + $0x28] sm:$0xff]
    %v76 = vld [vmem:[#allocation5 + $0x30] sm:$0xff]
    %v77 = vld [vmem:[#allocation5 + $0x38] sm:$0xff]
    %v78 = vld [vmem:[#allocation5 + $0x40] sm:$0xff]
    %v79 = vld [vmem:[#allocation5 + $0x48] sm:$0xff]
    %v80 = vld [vmem:[#allocation5 + $0x50] sm:$0xff]
    %v81 = vld [vmem:[#allocation5 + $0x58] sm:$0xff]
    %v82 = vld [vmem:[#allocation5 + $0x60] sm:$0xff]
    %v83 = vld [vmem:[#allocation5 + $0x68] sm:$0xff]
    %v84 = vld [vmem:[#allocation5 + $0x70] sm:$0xff]
    %v85 = vld [vmem:[#allocation5 + $0x78] sm:$0xff]
    %vm86 = vcmask 130048
    %v88 = vsel %vm86, %v62, 0
    %v91 = vsel %vm86, %v70, 0
    %v94 = vsel %vm86, %v71, 0
    %96 = vmatpush.xpose.msra.mxu0 0.0
    %97 = vmatpush.xpose.msra.mxu0 0.0
    %98 = vmatpush.xpose.msra.mxu0 0.0
    %99 = vmatpush.xpose.msra.mxu0 0.0
    %100 = vmatpush.xpose.msra.mxu0 0.0
    %101 = vmatpush.xpose.msra.mxu0 0.0
    %102 = vmatpush.xpose.msra.mxu0 0.0
    %103 = vmatpush.xpose.msra.mxu0 0.0
    %104 = vmatpush.xpose.msra.mxu0 0.0
    %105 = vmatpush.xpose.msra.mxu0 0.0
    %106 = vmatpush.xpose.msra.mxu0 0.0
    %107 = vmatpush.xpose.msra.mxu0 0.0
    %108 = vmatpush.xpose.msra.mxu0 0.0
    %109 = vmatpush.xpose.msra.mxu0 0.0
    %110 = vmatpush.xpose.msra.mxu0 %v94
    %111 = vmatpush.xpose.msra.mxu0 %v91
    %112 = vmatmul.f32.gmra.mxu0 %v88
    %v113 = vpop.f32.mrf.mxu0
    %v114 = vadd.f32 0.0, %v113
    %115 = vdwg.mxu0
    %v117 = vsel %vm86, %v63, 0
    %v120 = vsel %vm86, %v72, 0
    %v123 = vsel %vm86, %v73, 0
    %125 = vmatpush.xpose.msra.mxu0 0.0
    %126 = vmatpush.xpose.msra.mxu0 0.0
    %127 = vmatpush.xpose.msra.mxu0 0.0
    %128 = vmatpush.xpose.msra.mxu0 0.0
    %129 = vmatpush.xpose.msra.mxu0 0.0
    %130 = vmatpush.xpose.msra.mxu0 0.0
    %131 = vmatpush.xpose.msra.mxu0 0.0
    %132 = vmatpush.xpose.msra.mxu0 0.0
    %133 = vmatpush.xpose.msra.mxu0 0.0
    %134 = vmatpush.xpose.msra.mxu0 0.0
    %135 = vmatpush.xpose.msra.mxu0 0.0
    %136 = vmatpush.xpose.msra.mxu0 0.0
    %137 = vmatpush.xpose.msra.mxu0 0.0
    %138 = vmatpush.xpose.msra.mxu0 0.0
    %139 = vmatpush.xpose.msra.mxu0 %v123
    %140 = vmatpush.xpose.msra.mxu0 %v120
    %141 = vmatmul.f32.gmra.mxu0 %v117
    %v142 = vpop.f32.mrf.mxu0
    %v143 = vadd.f32 0.0, %v142
    %144 = vdwg.mxu0
    %v146 = vsel %vm86, %v64, 0
    %v149 = vsel %vm86, %v74, 0
    %v152 = vsel %vm86, %v75, 0
    %154 = vmatpush.xpose.msra.mxu0 0.0
    %155 = vmatpush.xpose.msra.mxu0 0.0
    %156 = vmatpush.xpose.msra.mxu0 0.0
    %157 = vmatpush.xpose.msra.mxu0 0.0
    %158 = vmatpush.xpose.msra.mxu0 0.0
    %159 = vmatpush.xpose.msra.mxu0 0.0
    %160 = vmatpush.xpose.msra.mxu0 0.0
    %161 = vmatpush.xpose.msra.mxu0 0.0
    %162 = vmatpush.xpose.msra.mxu0 0.0
    %163 = vmatpush.xpose.msra.mxu0 0.0
    %164 = vmatpush.xpose.msra.mxu0 0.0
    %165 = vmatpush.xpose.msra.mxu0 0.0
    %166 = vmatpush.xpose.msra.mxu0 0.0
    %167 = vmatpush.xpose.msra.mxu0 0.0
    %168 = vmatpush.xpose.msra.mxu0 %v152
    %169 = vmatpush.xpose.msra.mxu0 %v149
    %170 = vmatmul.f32.gmra.mxu0 %v146
    %v171 = vpop.f32.mrf.mxu0
    %v172 = vadd.f32 0.0, %v171
    %173 = vdwg.mxu0
    %v175 = vsel %vm86, %v65, 0
    %v178 = vsel %vm86, %v76, 0
    %v181 = vsel %vm86, %v77, 0
    %183 = vmatpush.xpose.msra.mxu0 0.0
    %184 = vmatpush.xpose.msra.mxu0 0.0
    %185 = vmatpush.xpose.msra.mxu0 0.0
    %186 = vmatpush.xpose.msra.mxu0 0.0
    %187 = vmatpush.xpose.msra.mxu0 0.0
    %188 = vmatpush.xpose.msra.mxu0 0.0
    %189 = vmatpush.xpose.msra.mxu0 0.0
    %190 = vmatpush.xpose.msra.mxu0 0.0
    %191 = vmatpush.xpose.msra.mxu0 0.0
    %192 = vmatpush.xpose.msra.mxu0 0.0
    %193 = vmatpush.xpose.msra.mxu0 0.0
    %194 = vmatpush.xpose.msra.mxu0 0.0
    %195 = vmatpush.xpose.msra.mxu0 0.0
    %196 = vmatpush.xpose.msra.mxu0 0.0
    %197 = vmatpush.xpose.msra.mxu0 %v181
    %198 = vmatpush.xpose.msra.mxu0 %v178
    %199 = vmatmul.f32.gmra.mxu0 %v175
    %v200 = vpop.f32.mrf.mxu0
    %v201 = vadd.f32 0.0, %v200
    %202 = vdwg.mxu0
    %v204 = vsel %vm86, %v66, 0
    %v207 = vsel %vm86, %v78, 0
    %v210 = vsel %vm86, %v79, 0
    %212 = vmatpush.xpose.msra.mxu0 0.0
    %213 = vmatpush.xpose.msra.mxu0 0.0
    %214 = vmatpush.xpose.msra.mxu0 0.0
    %215 = vmatpush.xpose.msra.mxu0 0.0
    %216 = vmatpush.xpose.msra.mxu0 0.0
    %217 = vmatpush.xpose.msra.mxu0 0.0
    %218 = vmatpush.xpose.msra.mxu0 0.0
    %219 = vmatpush.xpose.msra.mxu0 0.0
    %220 = vmatpush.xpose.msra.mxu0 0.0
    %221 = vmatpush.xpose.msra.mxu0 0.0
    %222 = vmatpush.xpose.msra.mxu0 0.0
    %223 = vmatpush.xpose.msra.mxu0 0.0
    %224 = vmatpush.xpose.msra.mxu0 0.0
    %225 = vmatpush.xpose.msra.mxu0 0.0
    %226 = vmatpush.xpose.msra.mxu0 %v210
    %227 = vmatpush.xpose.msra.mxu0 %v207
    %228 = vmatmul.f32.gmra.mxu0 %v204
    %v229 = vpop.f32.mrf.mxu0
    %v230 = vadd.f32 0.0, %v229
    %231 = vdwg.mxu0
    %v233 = vsel %vm86, %v67, 0
    %v236 = vsel %vm86, %v80, 0
    %v239 = vsel %vm86, %v81, 0
    %241 = vmatpush.xpose.msra.mxu0 0.0
    %242 = vmatpush.xpose.msra.mxu0 0.0
    %243 = vmatpush.xpose.msra.mxu0 0.0
    %244 = vmatpush.xpose.msra.mxu0 0.0
    %245 = vmatpush.xpose.msra.mxu0 0.0
    %246 = vmatpush.xpose.msra.mxu0 0.0
    %247 = vmatpush.xpose.msra.mxu0 0.0
    %248 = vmatpush.xpose.msra.mxu0 0.0
    %249 = vmatpush.xpose.msra.mxu0 0.0
    %250 = vmatpush.xpose.msra.mxu0 0.0
    %251 = vmatpush.xpose.msra.mxu0 0.0
    %252 = vmatpush.xpose.msra.mxu0 0.0
    %253 = vmatpush.xpose.msra.mxu0 0.0
    %254 = vmatpush.xpose.msra.mxu0 0.0
    %255 = vmatpush.xpose.msra.mxu0 %v239
    %256 = vmatpush.xpose.msra.mxu0 %v236
    %257 = vmatmul.f32.gmra.mxu0 %v233
    %v258 = vpop.f32.mrf.mxu0
    %v259 = vadd.f32 0.0, %v258
    %260 = vdwg.mxu0
    %v262 = vsel %vm86, %v68, 0
    %v265 = vsel %vm86, %v82, 0
    %v268 = vsel %vm86, %v83, 0
    %270 = vmatpush.xpose.msra.mxu0 0.0
    %271 = vmatpush.xpose.msra.mxu0 0.0
    %272 = vmatpush.xpose.msra.mxu0 0.0
    %273 = vmatpush.xpose.msra.mxu0 0.0
    %274 = vmatpush.xpose.msra.mxu0 0.0
    %275 = vmatpush.xpose.msra.mxu0 0.0
    %276 = vmatpush.xpose.msra.mxu0 0.0
    %277 = vmatpush.xpose.msra.mxu0 0.0
    %278 = vmatpush.xpose.msra.mxu0 0.0
    %279 = vmatpush.xpose.msra.mxu0 0.0
    %280 = vmatpush.xpose.msra.mxu0 0.0
    %281 = vmatpush.xpose.msra.mxu0 0.0
    %282 = vmatpush.xpose.msra.mxu0 0.0
    %283 = vmatpush.xpose.msra.mxu0 0.0
    %284 = vmatpush.xpose.msra.mxu0 %v268
    %285 = vmatpush.xpose.msra.mxu0 %v265
    %286 = vmatmul.f32.gmra.mxu0 %v262
    %v287 = vpop.f32.mrf.mxu0
    %v288 = vadd.f32 0.0, %v287
    %289 = vdwg.mxu0
    %v291 = vsel %vm86, %v69, 0
    %v294 = vsel %vm86, %v84, 0
    %v297 = vsel %vm86, %v85, 0
    %299 = vmatpush.xpose.msra.mxu0 0.0
    %300 = vmatpush.xpose.msra.mxu0 0.0
    %301 = vmatpush.xpose.msra.mxu0 0.0
    %302 = vmatpush.xpose.msra.mxu0 0.0
    %303 = vmatpush.xpose.msra.mxu0 0.0
    %304 = vmatpush.xpose.msra.mxu0 0.0
    %305 = vmatpush.xpose.msra.mxu0 0.0
    %306 = vmatpush.xpose.msra.mxu0 0.0
    %307 = vmatpush.xpose.msra.mxu0 0.0
    %308 = vmatpush.xpose.msra.mxu0 0.0
    %309 = vmatpush.xpose.msra.mxu0 0.0
    %310 = vmatpush.xpose.msra.mxu0 0.0
    %311 = vmatpush.xpose.msra.mxu0 0.0
    %312 = vmatpush.xpose.msra.mxu0 0.0
    %313 = vmatpush.xpose.msra.mxu0 %v297
    %314 = vmatpush.xpose.msra.mxu0 %v294
    %315 = vmatmul.f32.gmra.mxu0 %v291
    %v316 = vpop.f32.mrf.mxu0
    %v317 = vadd.f32 0.0, %v316
    %318 = vdwg.mxu0
    %v319 = vsel %vm86, %v114, -inf
    %320 = vmax.xlane.f32.xlu0 %v319
    %v321 = vpop.xlane.xlu0 %320
    %v322 = vsel %vm86, %v143, -inf
    %323 = vmax.xlane.f32.xlu0 %v322
    %v324 = vpop.xlane.xlu0 %323
    %v325 = vsel %vm86, %v172, -inf
    %326 = vmax.xlane.f32.xlu0 %v325
    %v327 = vpop.xlane.xlu0 %326
    %v328 = vsel %vm86, %v201, -inf
    %329 = vmax.xlane.f32.xlu0 %v328
    %v330 = vpop.xlane.xlu0 %329
    %v331 = vsel %vm86, %v230, -inf
    %332 = vmax.xlane.f32.xlu0 %v331
    %v333 = vpop.xlane.xlu0 %332
    %v334 = vsel %vm86, %v259, -inf
    %335 = vmax.xlane.f32.xlu0 %v334
    %v336 = vpop.xlane.xlu0 %335
    %v337 = vsel %vm86, %v288, -inf
    %338 = vmax.xlane.f32.xlu0 %v337
    %v339 = vpop.xlane.xlu0 %338
    %v340 = vsel %vm86, %v317, -inf
    %341 = vmax.xlane.f32.xlu0 %v340
    %v342 = vpop.xlane.xlu0 %341
    %v343 = vsub.f32 %v114, %v321
    %v344 = vsub.f32 %v143, %v324
    %v345 = vsub.f32 %v172, %v327
    %v346 = vsub.f32 %v201, %v330
    %v347 = vsub.f32 %v230, %v333
    %v348 = vsub.f32 %v259, %v336
    %v349 = vsub.f32 %v288, %v339
    %v350 = vsub.f32 %v317, %v342
    %v351 = vmul.f32 %v343, 1.442695
    %v352 = vpow.pop %v351
    %v353 = vmul.f32 %v344, 1.442695
    %v354 = vpow.pop %v353
    %v355 = vmul.f32 %v345, 1.442695
    %v356 = vpow.pop %v355
    %v357 = vmul.f32 %v346, 1.442695
    %v358 = vpow.pop %v357
    %v359 = vmul.f32 %v347, 1.442695
    %v360 = vpow.pop %v359
    %v361 = vmul.f32 %v348, 1.442695
    %v362 = vpow.pop %v361
    %v363 = vmul.f32 %v349, 1.442695
    %v364 = vpow.pop %v363
    %v365 = vmul.f32 %v350, 1.442695
    %v366 = vpow.pop %v365
    %v367 = vsel %vm86, %v352, 0.0
    %368 = vadd.xlane.f32.xlu0 %v367
    %v369 = vpop.xlane.xlu0 %368
    %v370 = vsel %vm86, %v354, 0.0
    %371 = vadd.xlane.f32.xlu0 %v370
    %v372 = vpop.xlane.xlu0 %371
    %v373 = vsel %vm86, %v356, 0.0
    %374 = vadd.xlane.f32.xlu0 %v373
    %v375 = vpop.xlane.xlu0 %374
    %v376 = vsel %vm86, %v358, 0.0
    %377 = vadd.xlane.f32.xlu0 %v376
    %v378 = vpop.xlane.xlu0 %377
    %v379 = vsel %vm86, %v360, 0.0
    %380 = vadd.xlane.f32.xlu0 %v379
    %v381 = vpop.xlane.xlu0 %380
    %v382 = vsel %vm86, %v362, 0.0
    %383 = vadd.xlane.f32.xlu0 %v382
    %v384 = vpop.xlane.xlu0 %383
    %v385 = vsel %vm86, %v364, 0.0
    %386 = vadd.xlane.f32.xlu0 %v385
    %v387 = vpop.xlane.xlu0 %386
    %v388 = vsel %vm86, %v366, 0.0
    %389 = vadd.xlane.f32.xlu0 %v388
    %v390 = vpop.xlane.xlu0 %389
    %v391 = vrcp.pop %v369
    %v392 = vrcp.pop %v372
    %v393 = vrcp.pop %v375
    %v394 = vrcp.pop %v378
    %v395 = vrcp.pop %v381
    %v396 = vrcp.pop %v384
    %v397 = vrcp.pop %v387
    %v398 = vrcp.pop %v390
    %v399 = vmul.f32 %v352, %v391
    %v400 = vmul.f32 %v354, %v392
    %v401 = vmul.f32 %v356, %v393
    %v402 = vmul.f32 %v358, %v394
    %v403 = vmul.f32 %v360, %v395
    %v404 = vmul.f32 %v362, %v396
    %v405 = vmul.f32 %v364, %v397
    %v406 = vmul.f32 %v366, %v398
    %v407 = vld [vmem:[#allocation7] sm:$0xff]
    %v408 = vld [vmem:[#allocation7 + $0x8] sm:$0xff]
    %v409 = vld [vmem:[#allocation7 + $0x10] sm:$0xff]
    %v410 = vld [vmem:[#allocation7 + $0x18] sm:$0xff]
    %v411 = vld [vmem:[#allocation7 + $0x20] sm:$0xff]
    %v412 = vld [vmem:[#allocation7 + $0x28] sm:$0xff]
    %v413 = vld [vmem:[#allocation7 + $0x30] sm:$0xff]
    %v414 = vld [vmem:[#allocation7 + $0x38] sm:$0xff]
    %v415 = vld [vmem:[#allocation7 + $0x40] sm:$0xff]
    %v416 = vld [vmem:[#allocation7 + $0x48] sm:$0xff]
    %v417 = vld [vmem:[#allocation7 + $0x50] sm:$0xff]
    %v418 = vld [vmem:[#allocation7 + $0x58] sm:$0xff]
    %v419 = vld [vmem:[#allocation7 + $0x60] sm:$0xff]
    %v420 = vld [vmem:[#allocation7 + $0x68] sm:$0xff]
    %v421 = vld [vmem:[#allocation7 + $0x70] sm:$0xff]
    %v422 = vld [vmem:[#allocation7 + $0x78] sm:$0xff]
    %v424 = vsel %vm86, %v399, 0
    %426 = vmatpush.msra.mxu0 0.0
    %427 = vmatpush.msra.mxu0 0.0
    %428 = vmatpush.msra.mxu0 0.0
    %429 = vmatpush.msra.mxu0 0.0
    %430 = vmatpush.msra.mxu0 0.0
    %431 = vmatpush.msra.mxu0 0.0
    %432 = vmatpush.msra.mxu0 0.0
    %433 = vmatpush.msra.mxu0 0.0
    %434 = vmatpush.msra.mxu0 0.0
    %435 = vmatpush.msra.mxu0 0.0
    %436 = vmatpush.msra.mxu0 0.0
    %437 = vmatpush.msra.mxu0 0.0
    %438 = vmatpush.msra.mxu0 0.0
    %439 = vmatpush.msra.mxu0 0.0
    %440 = vmatpush.msra.mxu0 %v408
    %441 = vmatpush.msra.mxu0 %v407
    %442 = vmatmul.f32.gmra.mxu0 %v424
    %v443 = vpop.f32.mrf.mxu0
    %v444 = vadd.f32 0.0, %v443
    %445 = vdwg.mxu0
    %v447 = vsel %vm86, %v400, 0
    %449 = vmatpush.msra.mxu0 0.0
    %450 = vmatpush.msra.mxu0 0.0
    %451 = vmatpush.msra.mxu0 0.0
    %452 = vmatpush.msra.mxu0 0.0
    %453 = vmatpush.msra.mxu0 0.0
    %454 = vmatpush.msra.mxu0 0.0
    %455 = vmatpush.msra.mxu0 0.0
    %456 = vmatpush.msra.mxu0 0.0
    %457 = vmatpush.msra.mxu0 0.0
    %458 = vmatpush.msra.mxu0 0.0
    %459 = vmatpush.msra.mxu0 0.0
    %460 = vmatpush.msra.mxu0 0.0
    %461 = vmatpush.msra.mxu0 0.0
    %462 = vmatpush.msra.mxu0 0.0
    %463 = vmatpush.msra.mxu0 %v410
    %464 = vmatpush.msra.mxu0 %v409
    %465 = vmatmul.f32.gmra.mxu0 %v447
    %v466 = vpop.f32.mrf.mxu0
    %v467 = vadd.f32 0.0, %v466
    %468 = vdwg.mxu0
    %v470 = vsel %vm86, %v401, 0
    %472 = vmatpush.msra.mxu0 0.0
    %473 = vmatpush.msra.mxu0 0.0
    %474 = vmatpush.msra.mxu0 0.0
    %475 = vmatpush.msra.mxu0 0.0
    %476 = vmatpush.msra.mxu0 0.0
    %477 = vmatpush.msra.mxu0 0.0
    %478 = vmatpush.msra.mxu0 0.0
    %479 = vmatpush.msra.mxu0 0.0
    %480 = vmatpush.msra.mxu0 0.0
    %481 = vmatpush.msra.mxu0 0.0
    %482 = vmatpush.msra.mxu0 0.0
    %483 = vmatpush.msra.mxu0 0.0
    %484 = vmatpush.msra.mxu0 0.0
    %485 = vmatpush.msra.mxu0 0.0
    %486 = vmatpush.msra.mxu0 %v412
    %487 = vmatpush.msra.mxu0 %v411
    %488 = vmatmul.f32.gmra.mxu0 %v470
    %v489 = vpop.f32.mrf.mxu0
    %v490 = vadd.f32 0.0, %v489
    %491 = vdwg.mxu0
    %v493 = vsel %vm86, %v402, 0
    %495 = vmatpush.msra.mxu0 0.0
    %496 = vmatpush.msra.mxu0 0.0
    %497 = vmatpush.msra.mxu0 0.0
    %498 = vmatpush.msra.mxu0 0.0
    %499 = vmatpush.msra.mxu0 0.0
    %500 = vmatpush.msra.mxu0 0.0
    %501 = vmatpush.msra.mxu0 0.0
    %502 = vmatpush.msra.mxu0 0.0
    %503 = vmatpush.msra.mxu0 0.0
    %504 = vmatpush.msra.mxu0 0.0
    %505 = vmatpush.msra.mxu0 0.0
    %506 = vmatpush.msra.mxu0 0.0
    %507 = vmatpush.msra.mxu0 0.0
    %508 = vmatpush.msra.mxu0 0.0
    %509 = vmatpush.msra.mxu0 %v414
    %510 = vmatpush.msra.mxu0 %v413
    %511 = vmatmul.f32.gmra.mxu0 %v493
    %v512 = vpop.f32.mrf.mxu0
    %v513 = vadd.f32 0.0, %v512
    %514 = vdwg.mxu0
    %v516 = vsel %vm86, %v403, 0
    %518 = vmatpush.msra.mxu0 0.0
    %519 = vmatpush.msra.mxu0 0.0
    %520 = vmatpush.msra.mxu0 0.0
    %521 = vmatpush.msra.mxu0 0.0
    %522 = vmatpush.msra.mxu0 0.0
    %523 = vmatpush.msra.mxu0 0.0
    %524 = vmatpush.msra.mxu0 0.0
    %525 = vmatpush.msra.mxu0 0.0
    %526 = vmatpush.msra.mxu0 0.0
    %527 = vmatpush.msra.mxu0 0.0
    %528 = vmatpush.msra.mxu0 0.0
    %529 = vmatpush.msra.mxu0 0.0
    %530 = vmatpush.msra.mxu0 0.0
    %531 = vmatpush.msra.mxu0 0.0
    %532 = vmatpush.msra.mxu0 %v416
    %533 = vmatpush.msra.mxu0 %v415
    %534 = vmatmul.f32.gmra.mxu0 %v516
    %v535 = vpop.f32.mrf.mxu0
    %v536 = vadd.f32 0.0, %v535
    %537 = vdwg.mxu0
    %v539 = vsel %vm86, %v404, 0
    %541 = vmatpush.msra.mxu0 0.0
    %542 = vmatpush.msra.mxu0 0.0
    %543 = vmatpush.msra.mxu0 0.0
    %544 = vmatpush.msra.mxu0 0.0
    %545 = vmatpush.msra.mxu0 0.0
    %546 = vmatpush.msra.mxu0 0.0
    %547 = vmatpush.msra.mxu0 0.0
    %548 = vmatpush.msra.mxu0 0.0
    %549 = vmatpush.msra.mxu0 0.0
    %550 = vmatpush.msra.mxu0 0.0
    %551 = vmatpush.msra.mxu0 0.0
    %552 = vmatpush.msra.mxu0 0.0
    %553 = vmatpush.msra.mxu0 0.0
    %554 = vmatpush.msra.mxu0 0.0
    %555 = vmatpush.msra.mxu0 %v418
    %556 = vmatpush.msra.mxu0 %v417
    %557 = vmatmul.f32.gmra.mxu0 %v539
    %v558 = vpop.f32.mrf.mxu0
    %v559 = vadd.f32 0.0, %v558
    %560 = vdwg.mxu0
    %v562 = vsel %vm86, %v405, 0
    %564 = vmatpush.msra.mxu0 0.0
    %565 = vmatpush.msra.mxu0 0.0
    %566 = vmatpush.msra.mxu0 0.0
    %567 = vmatpush.msra.mxu0 0.0
    %568 = vmatpush.msra.mxu0 0.0
    %569 = vmatpush.msra.mxu0 0.0
    %570 = vmatpush.msra.mxu0 0.0
    %571 = vmatpush.msra.mxu0 0.0
    %572 = vmatpush.msra.mxu0 0.0
    %573 = vmatpush.msra.mxu0 0.0
    %574 = vmatpush.msra.mxu0 0.0
    %575 = vmatpush.msra.mxu0 0.0
    %576 = vmatpush.msra.mxu0 0.0
    %577 = vmatpush.msra.mxu0 0.0
    %578 = vmatpush.msra.mxu0 %v420
    %579 = vmatpush.msra.mxu0 %v419
    %580 = vmatmul.f32.gmra.mxu0 %v562
    %v581 = vpop.f32.mrf.mxu0
    %v582 = vadd.f32 0.0, %v581
    %583 = vdwg.mxu0
    %v585 = vsel %vm86, %v406, 0
    %587 = vmatpush.msra.mxu0 0.0
    %588 = vmatpush.msra.mxu0 0.0
    %589 = vmatpush.msra.mxu0 0.0
    %590 = vmatpush.msra.mxu0 0.0
    %591 = vmatpush.msra.mxu0 0.0
    %592 = vmatpush.msra.mxu0 0.0
    %593 = vmatpush.msra.mxu0 0.0
    %594 = vmatpush.msra.mxu0 0.0
    %595 = vmatpush.msra.mxu0 0.0
    %596 = vmatpush.msra.mxu0 0.0
    %597 = vmatpush.msra.mxu0 0.0
    %598 = vmatpush.msra.mxu0 0.0
    %599 = vmatpush.msra.mxu0 0.0
    %600 = vmatpush.msra.mxu0 0.0
    %601 = vmatpush.msra.mxu0 %v422
    %602 = vmatpush.msra.mxu0 %v421
    %603 = vmatmul.f32.gmra.mxu0 %v585
    %v604 = vpop.f32.mrf.mxu0
    %v605 = vadd.f32 0.0, %v604
    %606 = vdwg.mxu0
    %607 = vst.msk [vmem:[#allocation8] sm:$0xff] %vm86, %v444
    %608 = vst.msk [vmem:[#allocation8 + $0x8] sm:$0xff] %vm86, %v467
    %609 = vst.msk [vmem:[#allocation8 + $0x10] sm:$0xff] %vm86, %v490
    %610 = vst.msk [vmem:[#allocation8 + $0x18] sm:$0xff] %vm86, %v513
    %611 = vst.msk [vmem:[#allocation8 + $0x20] sm:$0xff] %vm86, %v536
    %612 = vst.msk [vmem:[#allocation8 + $0x28] sm:$0xff] %vm86, %v559
    %613 = vst.msk [vmem:[#allocation8 + $0x30] sm:$0xff] %vm86, %v582
    %614 = vst.msk [vmem:[#allocation8 + $0x38] sm:$0xff] %vm86, %v605
    // Predicated region
    $region26: #{tpu_custom_call.1} parent=1 // pred_check
      _
    $region27: #{tpu_custom_call.1} parent=1 // pred_check_branch
      %616 = sbr.rel (0) target = $region29
    $region28: #{tpu_custom_call.1} parent=1 // pred_region
      %618 = vsyncadd [#allocation4], 0
      %s619 = sshll.u32 [#allocation8], 4
      %s620 = int_to_ptr.vmem [resolvable:$true] %s619
      %s621 = sshll.u32 %s3, 4
      %s622 = int_to_ptr.hbm [resolvable:$true] %s621
      %627 = dma.vmem_to_hbm [thread:$0]  %s620, 1024, %s622, [#allocation4], 128, 128, 8
    $region29: #{tpu_custom_call.1} parent=1 // pred_fallthru
      _
    // Predicated region
    $region30: #{tpu_custom_call.1} parent=1 // pred_check
      _
    $region31: #{tpu_custom_call.1} parent=1 // pred_check_branch
      %629 = sbr.rel (0) target = $region33
    $region32: #{tpu_custom_call.1} parent=1 // pred_region
      %631 = dma.done [#allocation4], 1024
    $region33: #{tpu_custom_call.1} parent=1 // pred_fallthru
      _
    %632 = vsyncpa [#allocation3], 1
    %633 = vsyncpa [#allocation6], 1
    %634 = vsyncpa [#allocation4], 1

// kernel: tpu_custom_call.1
$region0: #{tpu_custom_call.1}
  #allocation0 [shape = 'u32[]', space=smem, size = 0x4, offset = 0x4, fixed_abs, tag = 'smem constant byte address 0x4 - core index']
  #allocation1 [shape = 'u32[72,128]{1,0:T(1,128)}', space=vmem, size = 0x9000, scoped, tag = 'internal scratch']
  %s0 = inlined_call_operand.hbm [shape: f32[8,8,16], index: 0, kind: input, shape index: {}]
  %s1 = inlined_call_operand.hbm [shape: f32[8,16,16], index: 1, kind: input, shape index: {}]
  %s2 = inlined_call_operand.hbm [shape: f32[8,16,16], index: 2, kind: input, shape index: {}]
  %s3 = inlined_call_operand.hbm [shape: f32[8,8,16], index: 3, kind: output, shape index: {}]
  %s4 = sld [smem:[#allocation0]]
  $region34: #{tpu_custom_call.1} parent=0
    _
  %s6 = ssub.s32 1, %s4
  %s7 = scalar_select 0, %s6, %s4
  $region1: #{tpu_custom_call.1} parent=0
    #allocation2 [shape = 'u8[32768]{0}', space=vmem, size = 0x8000, scoped, tag = 'input window, operand 0, single buffered']
    #allocation3 [shape = 's32[1]{0}', space=sflag, size = 0x4, scoped, tag = 'scoped memory for tpu_custom_call.1']
    #allocation4 [shape = 's32[1]{0}', space=sflag, size = 0x4, scoped, tag = 'scoped memory for tpu_custom_call.1']
    #allocation5 [shape = 'u8[65536]{0}', space=vmem, size = 0x10000, scoped, tag = 'input window, operand 1, single buffered']
    #allocation6 [shape = 's32[1]{0}', space=sflag, size = 0x4, scoped, tag = 'scoped memory for tpu_custom_call.1']
    #allocation7 [shape = 'u8[65536]{0}', space=vmem, size = 0x10000, scoped, tag = 'input window, operand 2, single buffered']
    #allocation8 [shape = 'u8[32768]{0}', space=vmem, size = 0x8000, scoped, tag = 'output window, operand 0, single buffered']
    %8 = vsyncpa [#allocation3], 0
    %9 = vsyncpa [#allocation6], 0
    %10 = vsyncpa [#allocation4], 0
    // Predicated region
    $region2: #{tpu_custom_call.1} parent=1 // pred_check
      _
    $region3: #{tpu_custom_call.1} parent=1 // pred_check_branch
      %12 = sbr.rel (0) target = $region5
    $region4: #{tpu_custom_call.1} parent=1 // pred_region
      %14 = vsyncadd [#allocation3], 0
      %s15 = sshll.u32 %s0, 4
      %s16 = int_to_ptr.hbm [resolvable:$true] %s15
      %s17 = sshll.u32 [#allocation2], 4
      %s18 = int_to_ptr.vmem [resolvable:$true] %s17
      %23 = dma.hbm_to_vmem [thread:$0]  %s16, 1024, %s18, [#allocation3], 128, 128, 8
    $region5: #{tpu_custom_call.1} parent=1 // pred_fallthru
      _
    // Predicated region
    $region6: #{tpu_custom_call.1} parent=1 // pred_check
      _
    $region7: #{tpu_custom_call.1} parent=1 // pred_check_branch
      %25 = sbr.rel (0) target = $region9
    $region8: #{tpu_custom_call.1} parent=1 // pred_region
      %27 = vsyncadd [#allocation6], 0
      %s28 = sshll.u32 %s1, 4
      %s29 = int_to_ptr.hbm [resolvable:$true] %s28
      %s30 = sshll.u32 [#allocation5], 4
      %s31 = int_to_ptr.vmem [resolvable:$true] %s30
      %36 = dma.hbm_to_vmem [thread:$0]  %s29, 2048, %s31, [#allocation6], 128, 128, 8
    $region9: #{tpu_custom_call.1} parent=1 // pred_fallthru
      _
    // Predicated region
    $region10: #{tpu_custom_call.1} parent=1 // pred_check
      _
    $region11: #{tpu_custom_call.1} parent=1 // pred_check_branch
      %38 = sbr.rel (0) target = $region13
    $region12: #{tpu_custom_call.1} parent=1 // pred_region
      %40 = vsyncadd [#allocation6], 0
      %s41 = sshll.u32 %s2, 4
      %s42 = int_to_ptr.hbm [resolvable:$true] %s41
      %s43 = sshll.u32 [#allocation7], 4
      %s44 = int_to_ptr.vmem [resolvable:$true] %s43
      %49 = dma.hbm_to_vmem [thread:$0]  %s42, 2048, %s44, [#allocation6], 128, 128, 8
    $region13: #{tpu_custom_call.1} parent=1 // pred_fallthru
      _
    // Predicated region
    $region14: #{tpu_custom_call.1} parent=1 // pred_check
      _
    $region15: #{tpu_custom_call.1} parent=1 // pred_check_branch
      %51 = sbr.rel (0) target = $region17
    $region16: #{tpu_custom_call.1} parent=1 // pred_region
      %53 = dma.done [#allocation3], 1024
    $region17: #{tpu_custom_call.1} parent=1 // pred_fallthru
      _
    // Predicated region
    $region18: #{tpu_custom_call.1} parent=1 // pred_check
      _
    $region19: #{tpu_custom_call.1} parent=1 // pred_check_branch
      %55 = sbr.rel (0) target = $region21
    $region20: #{tpu_custom_call.1} parent=1 // pred_region
      %57 = dma.done [#allocation6], 2048
    $region21: #{tpu_custom_call.1} parent=1 // pred_fallthru
      _
    // Predicated region
    $region22: #{tpu_custom_call.1} parent=1 // pred_check
      _
    $region23: #{tpu_custom_call.1} parent=1 // pred_check_branch
      %59 = sbr.rel (0) target = $region25
    $region24: #{tpu_custom_call.1} parent=1 // pred_region
      %61 = dma.done [#allocation6], 2048
    $region25: #{tpu_custom_call.1} parent=1 // pred_fallthru
      _
    %v62 = vld [vmem:[#allocation2] sm:$0xff]
    %v63 = vld [vmem:[#allocation2 + $0x8] sm:$0xff]
    %v64 = vld [vmem:[#allocation2 + $0x10] sm:$0xff]
    %v65 = vld [vmem:[#allocation2 + $0x18] sm:$0xff]
    %v66 = vld [vmem:[#allocation2 + $0x20] sm:$0xff]
    %v67 = vld [vmem:[#allocation2 + $0x28] sm:$0xff]
    %v68 = vld [vmem:[#allocation2 + $0x30] sm:$0xff]
    %v69 = vld [vmem:[#allocation2 + $0x38] sm:$0xff]
    %v70 = vld [vmem:[#allocation5] sm:$0xff]
    %v71 = vld [vmem:[#allocation5 + $0x8] sm:$0xff]
    %v72 = vld [vmem:[#allocation5 + $0x10] sm:$0xff]
    %v73 = vld [vmem:[#allocation5 + $0x18] sm:$0xff]
    %v74 = vld [vmem:[#allocation5 + $0x20] sm:$0xff]
    %v75 = vld [vmem:[#allocation5 + $0x28] sm:$0xff]
    %v76 = vld [vmem:[#allocation5 + $0x30] sm:$0xff]
    %v77 = vld [vmem:[#allocation5 + $0x38] sm:$0xff]
    %v78 = vld [vmem:[#allocation5 + $0x40] sm:$0xff]
    %v79 = vld [vmem:[#allocation5 + $0x48] sm:$0xff]
    %v80 = vld [vmem:[#allocation5 + $0x50] sm:$0xff]
    %v81 = vld [vmem:[#allocation5 + $0x58] sm:$0xff]
    %v82 = vld [vmem:[#allocation5 + $0x60] sm:$0xff]
    %v83 = vld [vmem:[#allocation5 + $0x68] sm:$0xff]
    %v84 = vld [vmem:[#allocation5 + $0x70] sm:$0xff]
    %v85 = vld [vmem:[#allocation5 + $0x78] sm:$0xff]
    %vm86 = vcmask 130048
    %v88 = vsel %vm86, %v62, 0
    %v91 = vsel %vm86, %v70, 0
    %v94 = vsel %vm86, %v71, 0
    %96 = vmatpush.xpose.msra.mxu0 0.0
    %97 = vmatpush.xpose.msra.mxu0 0.0
    %98 = vmatpush.xpose.msra.mxu0 0.0
    %99 = vmatpush.xpose.msra.mxu0 0.0
    %100 = vmatpush.xpose.msra.mxu0 0.0
    %101 = vmatpush.xpose.msra.mxu0 0.0
    %102 = vmatpush.xpose.msra.mxu0 0.0
    %103 = vmatpush.xpose.msra.mxu0 0.0
    %104 = vmatpush.xpose.msra.mxu0 0.0
    %105 = vmatpush.xpose.msra.mxu0 0.0
    %106 = vmatpush.xpose.msra.mxu0 0.0
    %107 = vmatpush.xpose.msra.mxu0 0.0
    %108 = vmatpush.xpose.msra.mxu0 0.0
    %109 = vmatpush.xpose.msra.mxu0 0.0
    %110 = vmatpush.xpose.msra.mxu0 %v94
    %111 = vmatpush.xpose.msra.mxu0 %v91
    %112 = vmatmul.f32.gmra.mxu0 %v88
    %v113 = vpop.f32.mrf.mxu0
    %v114 = vadd.f32 0.0, %v113
    %115 = vdwg.mxu0
    %v117 = vsel %vm86, %v63, 0
    %v120 = vsel %vm86, %v72, 0
    %v123 = vsel %vm86, %v73, 0
    %125 = vmatpush.xpose.msra.mxu0 0.0
    %126 = vmatpush.xpose.msra.mxu0 0.0
    %127 = vmatpush.xpose.msra.mxu0 0.0
    %128 = vmatpush.xpose.msra.mxu0 0.0
    %129 = vmatpush.xpose.msra.mxu0 0.0
    %130 = vmatpush.xpose.msra.mxu0 0.0
    %131 = vmatpush.xpose.msra.mxu0 0.0
    %132 = vmatpush.xpose.msra.mxu0 0.0
    %133 = vmatpush.xpose.msra.mxu0 0.0
    %134 = vmatpush.xpose.msra.mxu0 0.0
    %135 = vmatpush.xpose.msra.mxu0 0.0
    %136 = vmatpush.xpose.msra.mxu0 0.0
    %137 = vmatpush.xpose.msra.mxu0 0.0
    %138 = vmatpush.xpose.msra.mxu0 0.0
    %139 = vmatpush.xpose.msra.mxu0 %v123
    %140 = vmatpush.xpose.msra.mxu0 %v120
    %141 = vmatmul.f32.gmra.mxu0 %v117
    %v142 = vpop.f32.mrf.mxu0
    %v143 = vadd.f32 0.0, %v142
    %144 = vdwg.mxu0
    %v146 = vsel %vm86, %v64, 0
    %v149 = vsel %vm86, %v74, 0
    %v152 = vsel %vm86, %v75, 0
    %154 = vmatpush.xpose.msra.mxu0 0.0
    %155 = vmatpush.xpose.msra.mxu0 0.0
    %156 = vmatpush.xpose.msra.mxu0 0.0
    %157 = vmatpush.xpose.msra.mxu0 0.0
    %158 = vmatpush.xpose.msra.mxu0 0.0
    %159 = vmatpush.xpose.msra.mxu0 0.0
    %160 = vmatpush.xpose.msra.mxu0 0.0
    %161 = vmatpush.xpose.msra.mxu0 0.0
    %162 = vmatpush.xpose.msra.mxu0 0.0
    %163 = vmatpush.xpose.msra.mxu0 0.0
    %164 = vmatpush.xpose.msra.mxu0 0.0
    %165 = vmatpush.xpose.msra.mxu0 0.0
    %166 = vmatpush.xpose.msra.mxu0 0.0
    %167 = vmatpush.xpose.msra.mxu0 0.0
    %168 = vmatpush.xpose.msra.mxu0 %v152
    %169 = vmatpush.xpose.msra.mxu0 %v149
    %170 = vmatmul.f32.gmra.mxu0 %v146
    %v171 = vpop.f32.mrf.mxu0
    %v172 = vadd.f32 0.0, %v171
    %173 = vdwg.mxu0
    %v175 = vsel %vm86, %v65, 0
    %v178 = vsel %vm86, %v76, 0
    %v181 = vsel %vm86, %v77, 0
    %183 = vmatpush.xpose.msra.mxu0 0.0
    %184 = vmatpush.xpose.msra.mxu0 0.0
    %185 = vmatpush.xpose.msra.mxu0 0.0
    %186 = vmatpush.xpose.msra.mxu0 0.0
    %187 = vmatpush.xpose.msra.mxu0 0.0
    %188 = vmatpush.xpose.msra.mxu0 0.0
    %189 = vmatpush.xpose.msra.mxu0 0.0
    %190 = vmatpush.xpose.msra.mxu0 0.0
    %191 = vmatpush.xpose.msra.mxu0 0.0
    %192 = vmatpush.xpose.msra.mxu0 0.0
    %193 = vmatpush.xpose.msra.mxu0 0.0
    %194 = vmatpush.xpose.msra.mxu0 0.0
    %195 = vmatpush.xpose.msra.mxu0 0.0
    %196 = vmatpush.xpose.msra.mxu0 0.0
    %197 = vmatpush.xpose.msra.mxu0 %v181
    %198 = vmatpush.xpose.msra.mxu0 %v178
    %199 = vmatmul.f32.gmra.mxu0 %v175
    %v200 = vpop.f32.mrf.mxu0
    %v201 = vadd.f32 0.0, %v200
    %202 = vdwg.mxu0
    %v204 = vsel %vm86, %v66, 0
    %v207 = vsel %vm86, %v78, 0
    %v210 = vsel %vm86, %v79, 0
    %212 = vmatpush.xpose.msra.mxu0 0.0
    %213 = vmatpush.xpose.msra.mxu0 0.0
    %214 = vmatpush.xpose.msra.mxu0 0.0
    %215 = vmatpush.xpose.msra.mxu0 0.0
    %216 = vmatpush.xpose.msra.mxu0 0.0
    %217 = vmatpush.xpose.msra.mxu0 0.0
    %218 = vmatpush.xpose.msra.mxu0 0.0
    %219 = vmatpush.xpose.msra.mxu0 0.0
    %220 = vmatpush.xpose.msra.mxu0 0.0
    %221 = vmatpush.xpose.msra.mxu0 0.0
    %222 = vmatpush.xpose.msra.mxu0 0.0
    %223 = vmatpush.xpose.msra.mxu0 0.0
    %224 = vmatpush.xpose.msra.mxu0 0.0
    %225 = vmatpush.xpose.msra.mxu0 0.0
    %226 = vmatpush.xpose.msra.mxu0 %v210
    %227 = vmatpush.xpose.msra.mxu0 %v207
    %228 = vmatmul.f32.gmra.mxu0 %v204
    %v229 = vpop.f32.mrf.mxu0
    %v230 = vadd.f32 0.0, %v229
    %231 = vdwg.mxu0
    %v233 = vsel %vm86, %v67, 0
    %v236 = vsel %vm86, %v80, 0
    %v239 = vsel %vm86, %v81, 0
    %241 = vmatpush.xpose.msra.mxu0 0.0
    %242 = vmatpush.xpose.msra.mxu0 0.0
    %243 = vmatpush.xpose.msra.mxu0 0.0
    %244 = vmatpush.xpose.msra.mxu0 0.0
    %245 = vmatpush.xpose.msra.mxu0 0.0
    %246 = vmatpush.xpose.msra.mxu0 0.0
    %247 = vmatpush.xpose.msra.mxu0 0.0
    %248 = vmatpush.xpose.msra.mxu0 0.0
    %249 = vmatpush.xpose.msra.mxu0 0.0
    %250 = vmatpush.xpose.msra.mxu0 0.0
    %251 = vmatpush.xpose.msra.mxu0 0.0
    %252 = vmatpush.xpose.msra.mxu0 0.0
    %253 = vmatpush.xpose.msra.mxu0 0.0
    %254 = vmatpush.xpose.msra.mxu0 0.0
    %255 = vmatpush.xpose.msra.mxu0 %v239
    %256 = vmatpush.xpose.msra.mxu0 %v236
    %257 = vmatmul.f32.gmra.mxu0 %v233
    %v258 = vpop.f32.mrf.mxu0
    %v259 = vadd.f32 0.0, %v258
    %260 = vdwg.mxu0
    %v262 = vsel %vm86, %v68, 0
    %v265 = vsel %vm86, %v82, 0
    %v268 = vsel %vm86, %v83, 0
    %270 = vmatpush.xpose.msra.mxu0 0.0
    %271 = vmatpush.xpose.msra.mxu0 0.0
    %272 = vmatpush.xpose.msra.mxu0 0.0
    %273 = vmatpush.xpose.msra.mxu0 0.0
    %274 = vmatpush.xpose.msra.mxu0 0.0
    %275 = vmatpush.xpose.msra.mxu0 0.0
    %276 = vmatpush.xpose.msra.mxu0 0.0
    %277 = vmatpush.xpose.msra.mxu0 0.0
    %278 = vmatpush.xpose.msra.mxu0 0.0
    %279 = vmatpush.xpose.msra.mxu0 0.0
    %280 = vmatpush.xpose.msra.mxu0 0.0
    %281 = vmatpush.xpose.msra.mxu0 0.0
    %282 = vmatpush.xpose.msra.mxu0 0.0
    %283 = vmatpush.xpose.msra.mxu0 0.0
    %284 = vmatpush.xpose.msra.mxu0 %v268
    %285 = vmatpush.xpose.msra.mxu0 %v265
    %286 = vmatmul.f32.gmra.mxu0 %v262
    %v287 = vpop.f32.mrf.mxu0
    %v288 = vadd.f32 0.0, %v287
    %289 = vdwg.mxu0
    %v291 = vsel %vm86, %v69, 0
    %v294 = vsel %vm86, %v84, 0
    %v297 = vsel %vm86, %v85, 0
    %299 = vmatpush.xpose.msra.mxu0 0.0
    %300 = vmatpush.xpose.msra.mxu0 0.0
    %301 = vmatpush.xpose.msra.mxu0 0.0
    %302 = vmatpush.xpose.msra.mxu0 0.0
    %303 = vmatpush.xpose.msra.mxu0 0.0
    %304 = vmatpush.xpose.msra.mxu0 0.0
    %305 = vmatpush.xpose.msra.mxu0 0.0
    %306 = vmatpush.xpose.msra.mxu0 0.0
    %307 = vmatpush.xpose.msra.mxu0 0.0
    %308 = vmatpush.xpose.msra.mxu0 0.0
    %309 = vmatpush.xpose.msra.mxu0 0.0
    %310 = vmatpush.xpose.msra.mxu0 0.0
    %311 = vmatpush.xpose.msra.mxu0 0.0
    %312 = vmatpush.xpose.msra.mxu0 0.0
    %313 = vmatpush.xpose.msra.mxu0 %v297
    %314 = vmatpush.xpose.msra.mxu0 %v294
    %315 = vmatmul.f32.gmra.mxu0 %v291
    %v316 = vpop.f32.mrf.mxu0
    %v317 = vadd.f32 0.0, %v316
    %318 = vdwg.mxu0
    %v319 = vsel %vm86, %v114, -inf
    %320 = vmax.xlane.f32.xlu0 %v319
    %v321 = vpop.xlane.xlu0 %320
    %v322 = vsel %vm86, %v143, -inf
    %323 = vmax.xlane.f32.xlu0 %v322
    %v324 = vpop.xlane.xlu0 %323
    %v325 = vsel %vm86, %v172, -inf
    %326 = vmax.xlane.f32.xlu0 %v325
    %v327 = vpop.xlane.xlu0 %326
    %v328 = vsel %vm86, %v201, -inf
    %329 = vmax.xlane.f32.xlu0 %v328
    %v330 = vpop.xlane.xlu0 %329
    %v331 = vsel %vm86, %v230, -inf
    %332 = vmax.xlane.f32.xlu0 %v331
    %v333 = vpop.xlane.xlu0 %332
    %v334 = vsel %vm86, %v259, -inf
    %335 = vmax.xlane.f32.xlu0 %v334
    %v336 = vpop.xlane.xlu0 %335
    %v337 = vsel %vm86, %v288, -inf
    %338 = vmax.xlane.f32.xlu0 %v337
    %v339 = vpop.xlane.xlu0 %338
    %v340 = vsel %vm86, %v317, -inf
    %341 = vmax.xlane.f32.xlu0 %v340
    %v342 = vpop.xlane.xlu0 %341
    %v343 = vsub.f32 %v114, %v321
    %v344 = vsub.f32 %v143, %v324
    %v345 = vsub.f32 %v172, %v327
    %v346 = vsub.f32 %v201, %v330
    %v347 = vsub.f32 %v230, %v333
    %v348 = vsub.f32 %v259, %v336
    %v349 = vsub.f32 %v288, %v339
    %v350 = vsub.f32 %v317, %v342
    %v351 = vmul.f32 %v343, 1.442695
    %v352 = vpow.pop %v351
    %v353 = vmul.f32 %v344, 1.442695
    %v354 = vpow.pop %v353
    %v355 = vmul.f32 %v345, 1.442695
    %v356 = vpow.pop %v355
    %v357 = vmul.f32 %v346, 1.442695
    %v358 = vpow.pop %v357
    %v359 = vmul.f32 %v347, 1.442695
    %v360 = vpow.pop %v359
    %v361 = vmul.f32 %v348, 1.442695
    %v362 = vpow.pop %v361
    %v363 = vmul.f32 %v349, 1.442695
    %v364 = vpow.pop %v363
    %v365 = vmul.f32 %v350, 1.442695
    %v366 = vpow.pop %v365
    %v367 = vsel %vm86, %v352, 0.0
    %368 = vadd.xlane.f32.xlu0 %v367
    %v369 = vpop.xlane.xlu0 %368
    %v370 = vsel %vm86, %v354, 0.0
    %371 = vadd.xlane.f32.xlu0 %v370
    %v372 = vpop.xlane.xlu0 %371
    %v373 = vsel %vm86, %v356, 0.0
    %374 = vadd.xlane.f32.xlu0 %v373
    %v375 = vpop.xlane.xlu0 %374
    %v376 = vsel %vm86, %v358, 0.0
    %377 = vadd.xlane.f32.xlu0 %v376
    %v378 = vpop.xlane.xlu0 %377
    %v379 = vsel %vm86, %v360, 0.0
    %380 = vadd.xlane.f32.xlu0 %v379
    %v381 = vpop.xlane.xlu0 %380
    %v382 = vsel %vm86, %v362, 0.0
    %383 = vadd.xlane.f32.xlu0 %v382
    %v384 = vpop.xlane.xlu0 %383
    %v385 = vsel %vm86, %v364, 0.0
    %386 = vadd.xlane.f32.xlu0 %v385
    %v387 = vpop.xlane.xlu0 %386
    %v388 = vsel %vm86, %v366, 0.0
    %389 = vadd.xlane.f32.xlu0 %v388
    %v390 = vpop.xlane.xlu0 %389
    %v391 = vrcp.pop %v369
    %v392 = vrcp.pop %v372
    %v393 = vrcp.pop %v375
    %v394 = vrcp.pop %v378
    %v395 = vrcp.pop %v381
    %v396 = vrcp.pop %v384
    %v397 = vrcp.pop %v387
    %v398 = vrcp.pop %v390
    %v399 = vmul.f32 %v352, %v391
    %v400 = vmul.f32 %v354, %v392
    %v401 = vmul.f32 %v356, %v393
    %v402 = vmul.f32 %v358, %v394
    %v403 = vmul.f32 %v360, %v395
    %v404 = vmul.f32 %v362, %v396
    %v405 = vmul.f32 %v364, %v397
    %v406 = vmul.f32 %v366, %v398
    %v407 = vld [vmem:[#allocation7] sm:$0xff]
    %v408 = vld [vmem:[#allocation7 + $0x8] sm:$0xff]
    %v409 = vld [vmem:[#allocation7 + $0x10] sm:$0xff]
    %v410 = vld [vmem:[#allocation7 + $0x18] sm:$0xff]
    %v411 = vld [vmem:[#allocation7 + $0x20] sm:$0xff]
    %v412 = vld [vmem:[#allocation7 + $0x28] sm:$0xff]
    %v413 = vld [vmem:[#allocation7 + $0x30] sm:$0xff]
    %v414 = vld [vmem:[#allocation7 + $0x38] sm:$0xff]
    %v415 = vld [vmem:[#allocation7 + $0x40] sm:$0xff]
    %v416 = vld [vmem:[#allocation7 + $0x48] sm:$0xff]
    %v417 = vld [vmem:[#allocation7 + $0x50] sm:$0xff]
    %v418 = vld [vmem:[#allocation7 + $0x58] sm:$0xff]
    %v419 = vld [vmem:[#allocation7 + $0x60] sm:$0xff]
    %v420 = vld [vmem:[#allocation7 + $0x68] sm:$0xff]
    %v421 = vld [vmem:[#allocation7 + $0x70] sm:$0xff]
    %v422 = vld [vmem:[#allocation7 + $0x78] sm:$0xff]
    %v424 = vsel %vm86, %v399, 0
    %426 = vmatpush.msra.mxu0 0.0
    %427 = vmatpush.msra.mxu0 0.0
    %428 = vmatpush.msra.mxu0 0.0
    %429 = vmatpush.msra.mxu0 0.0
    %430 = vmatpush.msra.mxu0 0.0
    %431 = vmatpush.msra.mxu0 0.0
    %432 = vmatpush.msra.mxu0 0.0
    %433 = vmatpush.msra.mxu0 0.0
    %434 = vmatpush.msra.mxu0 0.0
    %435 = vmatpush.msra.mxu0 0.0
    %436 = vmatpush.msra.mxu0 0.0
    %437 = vmatpush.msra.mxu0 0.0
    %438 = vmatpush.msra.mxu0 0.0
    %439 = vmatpush.msra.mxu0 0.0
    %440 = vmatpush.msra.mxu0 %v408
    %441 = vmatpush.msra.mxu0 %v407
    %442 = vmatmul.f32.gmra.mxu0 %v424
    %v443 = vpop.f32.mrf.mxu0
    %v444 = vadd.f32 0.0, %v443
    %445 = vdwg.mxu0
    %v447 = vsel %vm86, %v400, 0
    %449 = vmatpush.msra.mxu0 0.0
    %450 = vmatpush.msra.mxu0 0.0
    %451 = vmatpush.msra.mxu0 0.0
    %452 = vmatpush.msra.mxu0 0.0
    %453 = vmatpush.msra.mxu0 0.0
    %454 = vmatpush.msra.mxu0 0.0
    %455 = vmatpush.msra.mxu0 0.0
    %456 = vmatpush.msra.mxu0 0.0
    %457 = vmatpush.msra.mxu0 0.0
    %458 = vmatpush.msra.mxu0 0.0
    %459 = vmatpush.msra.mxu0 0.0
    %460 = vmatpush.msra.mxu0 0.0
    %461 = vmatpush.msra.mxu0 0.0
    %462 = vmatpush.msra.mxu0 0.0
    %463 = vmatpush.msra.mxu0 %v410
    %464 = vmatpush.msra.mxu0 %v409
    %465 = vmatmul.f32.gmra.mxu0 %v447
    %v466 = vpop.f32.mrf.mxu0
    %v467 = vadd.f32 0.0, %v466
    %468 = vdwg.mxu0
    %v470 = vsel %vm86, %v401, 0
    %472 = vmatpush.msra.mxu0 0.0
    %473 = vmatpush.msra.mxu0 0.0
    %474 = vmatpush.msra.mxu0 0.0
    %475 = vmatpush.msra.mxu0 0.0
    %476 = vmatpush.msra.mxu0 0.0
    %477 = vmatpush.msra.mxu0 0.0
    %478 = vmatpush.msra.mxu0 0.0
    %479 = vmatpush.msra.mxu0 0.0
    %480 = vmatpush.msra.mxu0 0.0
    %481 = vmatpush.msra.mxu0 0.0
    %482 = vmatpush.msra.mxu0 0.0
    %483 = vmatpush.msra.mxu0 0.0
    %484 = vmatpush.msra.mxu0 0.0
    %485 = vmatpush.msra.mxu0 0.0
    %486 = vmatpush.msra.mxu0 %v412
    %487 = vmatpush.msra.mxu0 %v411
    %488 = vmatmul.f32.gmra.mxu0 %v470
    %v489 = vpop.f32.mrf.mxu0
    %v490 = vadd.f32 0.0, %v489
    %491 = vdwg.mxu0
    %v493 = vsel %vm86, %v402, 0
    %495 = vmatpush.msra.mxu0 0.0
    %496 = vmatpush.msra.mxu0 0.0
    %497 = vmatpush.msra.mxu0 0.0
    %498 = vmatpush.msra.mxu0 0.0
    %499 = vmatpush.msra.mxu0 0.0
    %500 = vmatpush.msra.mxu0 0.0
    %501 = vmatpush.msra.mxu0 0.0
    %502 = vmatpush.msra.mxu0 0.0
    %503 = vmatpush.msra.mxu0 0.0
    %504 = vmatpush.msra.mxu0 0.0
    %505 = vmatpush.msra.mxu0 0.0
    %506 = vmatpush.msra.mxu0 0.0
    %507 = vmatpush.msra.mxu0 0.0
    %508 = vmatpush.msra.mxu0 0.0
    %509 = vmatpush.msra.mxu0 %v414
    %510 = vmatpush.msra.mxu0 %v413
    %511 = vmatmul.f32.gmra.mxu0 %v493
    %v512 = vpop.f32.mrf.mxu0
    %v513 = vadd.f32 0.0, %v512
    %514 = vdwg.mxu0
    %v516 = vsel %vm86, %v403, 0
    %518 = vmatpush.msra.mxu0 0.0
    %519 = vmatpush.msra.mxu0 0.0
    %520 = vmatpush.msra.mxu0 0.0
    %521 = vmatpush.msra.mxu0 0.0
    %522 = vmatpush.msra.mxu0 0.0
    %523 = vmatpush.msra.mxu0 0.0
    %524 = vmatpush.msra.mxu0 0.0
    %525 = vmatpush.msra.mxu0 0.0
    %526 = vmatpush.msra.mxu0 0.0
    %527 = vmatpush.msra.mxu0 0.0
    %528 = vmatpush.msra.mxu0 0.0
    %529 = vmatpush.msra.mxu0 0.0
    %530 = vmatpush.msra.mxu0 0.0
    %531 = vmatpush.msra.mxu0 0.0
    %532 = vmatpush.msra.mxu0 %v416
    %533 = vmatpush.msra.mxu0 %v415
    %534 = vmatmul.f32.gmra.mxu0 %v516
    %v535 = vpop.f32.mrf.mxu0
    %v536 = vadd.f32 0.0, %v535
    %537 = vdwg.mxu0
    %v539 = vsel %vm86, %v404, 0
    %541 = vmatpush.msra.mxu0 0.0
    %542 = vmatpush.msra.mxu0 0.0
    %543 = vmatpush.msra.mxu0 0.0
    %544 = vmatpush.msra.mxu0 0.0
    %545 = vmatpush.msra.mxu0 0.0
    %546 = vmatpush.msra.mxu0 0.0
    %547 = vmatpush.msra.mxu0 0.0
    %548 = vmatpush.msra.mxu0 0.0
    %549 = vmatpush.msra.mxu0 0.0
    %550 = vmatpush.msra.mxu0 0.0
    %551 = vmatpush.msra.mxu0 0.0
    %552 = vmatpush.msra.mxu0 0.0
    %553 = vmatpush.msra.mxu0 0.0
    %554 = vmatpush.msra.mxu0 0.0
    %555 = vmatpush.msra.mxu0 %v418
    %556 = vmatpush.msra.mxu0 %v417
    %557 = vmatmul.f32.gmra.mxu0 %v539
    %v558 = vpop.f32.mrf.mxu0
    %v559 = vadd.f32 0.0, %v558
    %560 = vdwg.mxu0
    %v562 = vsel %vm86, %v405, 0
    %564 = vmatpush.msra.mxu0 0.0
    %565 = vmatpush.msra.mxu0 0.0
    %566 = vmatpush.msra.mxu0 0.0
    %567 = vmatpush.msra.mxu0 0.0
    %568 = vmatpush.msra.mxu0 0.0
    %569 = vmatpush.msra.mxu0 0.0
    %570 = vmatpush.msra.mxu0 0.0
    %571 = vmatpush.msra.mxu0 0.0
    %572 = vmatpush.msra.mxu0 0.0
    %573 = vmatpush.msra.mxu0 0.0
    %574 = vmatpush.msra.mxu0 0.0
    %575 = vmatpush.msra.mxu0 0.0
    %576 = vmatpush.msra.mxu0 0.0
    %577 = vmatpush.msra.mxu0 0.0
    %578 = vmatpush.msra.mxu0 %v420
    %579 = vmatpush.msra.mxu0 %v419
    %580 = vmatmul.f32.gmra.mxu0 %v562
    %v581 = vpop.f32.mrf.mxu0
    %v582 = vadd.f32 0.0, %v581
    %583 = vdwg.mxu0
    %v585 = vsel %vm86, %v406, 0
    %587 = vmatpush.msra.mxu0 0.0
    %588 = vmatpush.msra.mxu0 0.0
    %589 = vmatpush.msra.mxu0 0.0
    %590 = vmatpush.msra.mxu0 0.0
    %591 = vmatpush.msra.mxu0 0.0
    %592 = vmatpush.msra.mxu0 0.0
    %593 = vmatpush.msra.mxu0 0.0
    %594 = vmatpush.msra.mxu0 0.0
    %595 = vmatpush.msra.mxu0 0.0
    %596 = vmatpush.msra.mxu0 0.0
    %597 = vmatpush.msra.mxu0 0.0
    %598 = vmatpush.msra.mxu0 0.0
    %599 = vmatpush.msra.mxu0 0.0
    %600 = vmatpush.msra.mxu0 0.0
    %601 = vmatpush.msra.mxu0 %v422
    %602 = vmatpush.msra.mxu0 %v421
    %603 = vmatmul.f32.gmra.mxu0 %v585
    %v604 = vpop.f32.mrf.mxu0
    %v605 = vadd.f32 0.0, %v604
    %606 = vdwg.mxu0
    %607 = vst.msk [vmem:[#allocation8] sm:$0xff] %vm86, %v444
    %608 = vst.msk [vmem:[#allocation8 + $0x8] sm:$0xff] %vm86, %v467
    %609 = vst.msk [vmem:[#allocation8 + $0x10] sm:$0xff] %vm86, %v490
    %610 = vst.msk [vmem:[#allocation8 + $0x18] sm:$0xff] %vm86, %v513
    %611 = vst.msk [vmem:[#allocation8 + $0x20] sm:$0xff] %vm86, %v536
    %612 = vst.msk [vmem:[#allocation8 + $0x28] sm:$0xff] %vm86, %v559
    %613 = vst.msk [vmem:[#allocation8 + $0x30] sm:$0xff] %vm86, %v582
    %614 = vst.msk [vmem:[#allocation8 + $0x38] sm:$0xff] %vm86, %v605
    // Predicated region
    $region26: #{tpu_custom_call.1} parent=1 // pred_check
      _
    $region27: #{tpu_custom_call.1} parent=1 // pred_check_branch
      %616 = sbr.rel (0) target = $region29
    $region28: #{tpu_custom_call.1} parent=1 // pred_region
      %618 = vsyncadd [#allocation4], 0
      %s619 = sshll.u32 [#allocation8], 4
      %s620 = int_to_ptr.vmem [resolvable:$true] %s619
      %s621 = sshll.u32 %s3, 4
      %s622 = int_to_ptr.hbm [resolvable:$true] %s621
      %627 = dma.vmem_to_hbm [thread:$0]  %s620, 1024, %s622, [#allocation4], 128, 128, 8
    $region29: #{tpu_custom_call.1} parent=1 // pred_fallthru
      _
    // Predicated region
    $region30: #{tpu_custom_call.1} parent=1 // pred_check
      _
    $region31: #{tpu_custom_call.1} parent=1 // pred_check_branch
      %629 = sbr.rel (0) target = $region33
    $region32: #{tpu_custom_call.1} parent=1 // pred_region
      %631 = dma.done [#allocation4], 1024
    $region33: #{tpu_custom_call.1} parent=1 // pred_fallthru
      _
    %632 = vsyncpa [#allocation3], 1
    %633 = vsyncpa [#allocation6], 1
    %634 = vsyncpa [#allocation4], 1

</llo_original>
